<compile_context>
chip_gen: v5e
topology: v5e:2x2
jax: 0.10.0
libtpu: 0.0.40
codegen_flags: <defaults>
</compile_context>

<pallas_src>
import numpy as np
import jax
import jax.numpy as jnp
from jax.experimental import pallas as pl
from jax.experimental.pallas import tpu as pltpu

_LABEL2MASK_THRESHOL = 100  # value used by the PoseCNN reference implementation


def _round_up(n, m):
    return ((n + m - 1) // m) * m


# ----------------------------- Pallas kernels --------------------------------

def _conv1x1_relu_kernel(x_ref, w_ref, b_ref, o_ref):
    # (C_out, C_in) @ (C_in, tile_n) on the MXU, bias + ReLU on the VPU.
    y = jnp.dot(w_ref[...], x_ref[...], preferred_element_type=jnp.float32)
    o_ref[...] = jnp.maximum(y + b_ref[...], 0.0)


def _add_conv1x1_kernel(a_ref, c_ref, w_ref, b_ref, o_ref):
    # Fused (x1 + x2_up) followed by the conv3 1x1 matmul + bias (no ReLU:
    # the PyTorch forward feeds conv3 straight into softmax).
    s = a_ref[...] + c_ref[...]
    o_ref[...] = (jnp.dot(w_ref[...], s, preferred_element_type=jnp.float32)
                  + b_ref[...])


def _softmax_argmax_kernel(x_ref, prob_ref, seg_ref):
    # Per-pixel softmax + argmax over the channel (sublane) axis.
    logits = x_ref[...]
    m = jnp.max(logits, axis=0, keepdims=True)
    e = jnp.exp(logits - m)
    s = jnp.sum(e, axis=0, keepdims=True)
    prob_ref[...] = e / s
    nc = logits.shape[0]
    ids = jax.lax.broadcasted_iota(jnp.int32, logits.shape, 0)
    is_max = logits == m
    seg_ref[...] = jnp.min(jnp.where(is_max, ids, jnp.int32(nc)),
                           axis=0, keepdims=True)


# ----------------------------- wrappers ---------------------------------------

def _prep_pixels(x_nchw, max_tile):
    """(B,C,H,W) -> (B,C,Npad) with Npad a multiple of tile_n (>=128)."""
    B, C, H, W = x_nchw.shape
    npix = H * W
    tile_n = min(max_tile, _round_up(npix, 128))
    npad = _round_up(npix, tile_n)
    x = x_nchw.reshape(B, C, npix)
    if npad != npix:
        x = jnp.pad(x, ((0, 0), (0, 0), (0, npad - npix)))
    return x, tile_n, npad, npix


def conv1x1_relu(x_nchw, w, b, max_tile=2048):
    # max_tile=2048 keeps double-buffered VMEM ~9 MiB for C_in=512, within the
    # 16 MiB v5e scoped default (v6e/v7x: 32 MiB) while hiding per-step overhead.
    B, C, H, W = x_nchw.shape
    c_out = w.shape[0]
    x, tile_n, npad, npix = _prep_pixels(x_nchw, max_tile)
    out = pl.pallas_call(
        _conv1x1_relu_kernel,
        out_shape=jax.ShapeDtypeStruct((B, c_out, npad), jnp.float32),
        grid=(B, npad // tile_n),
        in_specs=[
            pl.BlockSpec((pl.Squeezed(), C, tile_n), lambda bi, i: (bi, 0, i)),
            pl.BlockSpec((c_out, C), lambda bi, i: (0, 0)),
            pl.BlockSpec((c_out, 1), lambda bi, i: (0, 0)),
        ],
        out_specs=pl.BlockSpec((pl.Squeezed(), c_out, tile_n),
                               lambda bi, i: (bi, 0, i)),
        compiler_params=pltpu.CompilerParams(
            dimension_semantics=("parallel", "parallel")),
    )(x, w, b.reshape(c_out, 1))
    return out[:, :, :npix].reshape(B, c_out, H, W)


def add_conv1x1(x1_nchw, x2_nchw, w, b, max_tile=2048):
    # logits = w @ (x1 + x2_up) + b, per pixel, at the *low* resolution.
    B, C, H, W = x1_nchw.shape
    c_out = w.shape[0]
    xa, tile_n, npad, npix = _prep_pixels(x1_nchw, max_tile)
    xb, _, _, _ = _prep_pixels(x2_nchw, max_tile)
    out = pl.pallas_call(
        _add_conv1x1_kernel,
        out_shape=jax.ShapeDtypeStruct((B, c_out, npad), jnp.float32),
        grid=(B, npad // tile_n),
        in_specs=[
            pl.BlockSpec((pl.Squeezed(), C, tile_n), lambda bi, i: (bi, 0, i)),
            pl.BlockSpec((pl.Squeezed(), C, tile_n), lambda bi, i: (bi, 0, i)),
            pl.BlockSpec((c_out, C), lambda bi, i: (0, 0)),
            pl.BlockSpec((c_out, 1), lambda bi, i: (0, 0)),
        ],
        out_specs=pl.BlockSpec((pl.Squeezed(), c_out, tile_n),
                               lambda bi, i: (bi, 0, i)),
        compiler_params=pltpu.CompilerParams(
            dimension_semantics=("parallel", "parallel")),
    )(xa, xb, w, b.reshape(c_out, 1))
    return out[:, :, :npix].reshape(B, c_out, H, W)


def softmax_argmax(logits_nchw, max_tile=4096):
    # 480*640 = 75 * 4096: exact tiling, lane-dense (11, 4096) / (1, 4096) stores.
    B, C, H, W = logits_nchw.shape
    x, tile_n, npad, npix = _prep_pixels(logits_nchw, max_tile)
    prob, seg = pl.pallas_call(
        _softmax_argmax_kernel,
        out_shape=(jax.ShapeDtypeStruct((B, C, npad), jnp.float32),
                   jax.ShapeDtypeStruct((B, 1, npad), jnp.int32)),
        grid=(B, npad // tile_n),
        in_specs=[
            pl.BlockSpec((pl.Squeezed(), C, tile_n), lambda bi, i: (bi, 0, i)),
        ],
        out_specs=(pl.BlockSpec((pl.Squeezed(), C, tile_n),
                                lambda bi, i: (bi, 0, i)),
                   pl.BlockSpec((pl.Squeezed(), 1, tile_n),
                                lambda bi, i: (bi, 0, i))),
        compiler_params=pltpu.CompilerParams(
            dimension_semantics=("parallel", "parallel")),
    )(x)
    prob = prob[:, :, :npix].reshape(B, C, H, W)
    # int32 (PyTorch returns int64; semantics identical for label2bbx).
    seg = seg[:, 0, :npix].reshape(B, H, W)
    return prob, seg


# ----------------------------- JAX glue ---------------------------------------

def _interp_matrix(out_size, in_size):
    # Dense bilinear interpolation matrix, PyTorch align_corners=False
    # (half-pixel centers, clamped to 0).  Each row sums to exactly 1.
    scale = in_size / out_size
    dst = np.arange(out_size, dtype=np.float64)
    src = np.maximum((dst + 0.5) * scale - 0.5, 0.0)
    i0 = np.clip(np.floor(src).astype(np.int64), 0, in_size - 1)
    i1 = np.minimum(i0 + 1, in_size - 1)
    w1 = src - i0
    w0 = 1.0 - w1
    A = np.zeros((out_size, in_size), dtype=np.float32)
    A[np.arange(out_size), i0] += w0.astype(np.float32)
    A[np.arange(out_size), i1] += w1.astype(np.float32)
    return A


def bilinear_resize_nchw(x, out_h, out_w):
    # Separable matmul form: out = A_h @ X @ A_w^T per (batch, channel).
    # Runs on the MXU via XLA dot_general (no gathers, no big gather temps).
    _, _, H, W = x.shape
    Ah = jnp.asarray(_interp_matrix(out_h, H))
    Aw = jnp.asarray(_interp_matrix(out_w, W))
    y = jnp.einsum('Hh,bchw->bcHw', Ah, x)
    return jnp.einsum('Ww,bchw->bchW', Aw, y)


# TODO(synk): label2bbx builds a data-dependent-length box list (dynamic output
# shape has no static-shape JAX/Pallas equivalent); done host-side with numpy
# on the kernel-produced segmentation map.
def label2bbx(segmentation, num_classes):
    seg = np.asarray(segmentation)
    bbx = []
    bs = seg.shape[0]
    for batch_id in range(bs):
        for cls_id in range(num_classes):
            if cls_id != 0:
                ys, xs = np.nonzero(seg[batch_id] == cls_id)
                if ys.size >= _LABEL2MASK_THRESHOL:
                    bbx.append([batch_id, int(xs.min()), int(ys.min()),
                                int(xs.max()), int(ys.max()), cls_id])
    return np.asarray(bbx, dtype=np.int64)


def init_params(key, num_classes=10, input_dim=512, hidden_layer_dim=64):
    k1, k2, k3 = jax.random.split(key, 3)

    def kaiming(k, c_out, c_in):  # kaiming_normal_, fan_in, 1x1 conv
        return (jax.random.normal(k, (c_out, c_in), jnp.float32)
                * np.sqrt(2.0 / c_in)).astype(jnp.float32)

    return {
        "w1": kaiming(k1, hidden_layer_dim, input_dim),
        "b1": jnp.zeros((hidden_layer_dim,), jnp.float32),
        "w2": kaiming(k2, hidden_layer_dim, input_dim),
        "b2": jnp.zeros((hidden_layer_dim,), jnp.float32),
        "w3": kaiming(k3, num_classes + 1, hidden_layer_dim),
        "b3": jnp.zeros((num_classes + 1,), jnp.float32),
    }


def segmentation_branch_forward(feature1, feature2, params, num_classes):
    x1 = conv1x1_relu(feature1, params["w1"], params["b1"])        # relu1(conv1)
    x2 = conv1x1_relu(feature2, params["w2"], params["b2"])        # relu2(conv2)
    x2_up = bilinear_resize_nchw(x2, x1.shape[2], x1.shape[3])     # interp to x1
    # conv3 commuted ahead of the 480x640 upsample: a 1x1 conv (linear in
    # channels) and a bilinear resize (per-pixel convex combination, weights
    # sum to 1 so bias is preserved) commute exactly.  Only 11 logit channels
    # are ever upsampled, and the head matmul runs at low resolution.
    logits_low = add_conv1x1(x1, x2_up, params["w3"], params["b3"])   # conv3(x1+x2_up)
    logits = bilinear_resize_nchw(logits_low, 480, 640)               # interp to (480,640)
    probability, segmentation = softmax_argmax(logits)                # softmax + argmax
    bbx = label2bbx(segmentation, num_classes)
    return probability, segmentation, bbx


if __name__ == "__main__":
    num_classes, input_dim, hidden = 10, 64, 32   # small synthetic dims
    B, h, w = 2, 16, 16
    key = jax.random.PRNGKey(0)
    kp, kf1, kf2 = jax.random.split(key, 3)
    params = init_params(kp, num_classes, input_dim, hidden)
    feature1 = jax.random.normal(kf1, (B, input_dim, h, w), jnp.float32)
    feature2 = jax.random.normal(kf2, (B, input_dim, h // 2, w // 2), jnp.float32)

    prob, seg, bbx = segmentation_branch_forward(feature1, feature2, params, num_classes)
    jax.block_until_ready((prob, seg))

    assert prob.shape == (B, num_classes + 1, 480, 640)
    assert seg.shape == (B, 480, 640)
    assert bool(jnp.allclose(jnp.sum(prob, axis=1), 1.0, atol=1e-5))
    print("KERNEL_OK")
</pallas_src>

<mosaic_0001>
module attributes {stable_mosaic.version = 11 : i64} {
  func.func @_conv1x1_relu_kernel(%arg0: i32, %arg1: i32, %arg2: memref<1x64x256xf32, #tpu.memory_space<vmem>>, %arg3: memref<32x64xf32, #tpu.memory_space<vmem>>, %arg4: memref<32x1xf32, #tpu.memory_space<vmem>>, %arg5: memref<1x32x256xf32, #tpu.memory_space<vmem>>) attributes {dimension_semantics = [#tpu.dimension_semantics<parallel>, #tpu.dimension_semantics<parallel>], iteration_bounds = array<i64: 2, 1>, scalar_prefetch = 0 : i64, scratch_operands = 0 : i64, tpu.core_type = #tpu.core_type<tc>, window_params = [{transform_indices = @transform_0, window_bounds = array<i64: 1, 64, 256>}, {pipeline_mode = #tpu.pipeline_mode<synchronous>, transform_indices = @transform_1, window_bounds = array<i64: 32, 64>}, {pipeline_mode = #tpu.pipeline_mode<synchronous>, transform_indices = @transform_2, window_bounds = array<i64: 32, 1>}, {transform_indices = @transform_3, window_bounds = array<i64: 1, 32, 256>}]} {
    %c0 = arith.constant 0 : index
    %c0_0 = arith.constant 0 : index
    %0 = vector.load %arg3[%c0, %c0_0] : memref<32x64xf32, #tpu.memory_space<vmem>>, vector<32x64xf32>
    %c0_1 = arith.constant 0 : index
    %c0_2 = arith.constant 0 : index
    %c0_3 = arith.constant 0 : index
    %1 = vector.load %arg2[%c0_1, %c0_2, %c0_3] : memref<1x64x256xf32, #tpu.memory_space<vmem>>, vector<1x64x256xf32>
    %2 = vector.shape_cast %1 : vector<1x64x256xf32> to vector<64x256xf32>
    %cst = arith.constant dense<0.000000e+00> : vector<32x256xf32>
    %3 = tpu.matmul %0, %2, %cst {dimension_numbers = #tpu.dot_dimension_numbers<[1], [0], [0], [1], [0, 0, 1, 1], [], []>} : vector<32x64xf32>, vector<64x256xf32>, vector<32x256xf32> -> vector<32x256xf32>
    %c0_4 = arith.constant 0 : index
    %c0_5 = arith.constant 0 : index
    %4 = vector.load %arg4[%c0_4, %c0_5] : memref<32x1xf32, #tpu.memory_space<vmem>>, vector<32x1xf32>
    %5 = vector.broadcast %4 : vector<32x1xf32> to vector<32x256xf32>
    %6 = arith.addf %3, %5 : vector<32x256xf32>
    %cst_6 = arith.constant 0.000000e+00 : f32
    %7 = vector.broadcast %cst_6 : f32 to vector<32x256xf32>
    %8 = arith.maximumf %6, %7 : vector<32x256xf32>
    %c0_7 = arith.constant 0 : index
    %c0_8 = arith.constant 0 : index
    %c0_9 = arith.constant 0 : index
    %9 = vector.load %arg5[%c0_7, %c0_8, %c0_9] : memref<1x32x256xf32, #tpu.memory_space<vmem>>, vector<1x32x256xf32>
    %10 = vector.shape_cast %9 : vector<1x32x256xf32> to vector<32x256xf32>
    %11 = vector.shape_cast %8 : vector<32x256xf32> to vector<1x32x256xf32>
    tpu.vector_store %arg5[%c0_7, %c0_8, %c0_9], %11 {strides = array<i32>} : memref<1x32x256xf32, #tpu.memory_space<vmem>>, vector<1x32x256xf32>,
    return
  }
  func.func @transform_0(%arg0: i32, %arg1: i32) -> (i32, i32, i32) {
    %c0_i32 = arith.constant 0 : i32
    %c0_i32_0 = arith.constant 0 : i32
    return %arg0, %c0_i32, %arg1 : i32, i32, i32
  }
  func.func @transform_1(%arg0: i32, %arg1: i32) -> (i32, i32) {
    %c0_i32 = arith.constant 0 : i32
    %c0_i32_0 = arith.constant 0 : i32
    %c0_i32_1 = arith.constant 0 : i32
    return %c0_i32, %c0_i32_0 : i32, i32
  }
  func.func @transform_2(%arg0: i32, %arg1: i32) -> (i32, i32) {
    %c0_i32 = arith.constant 0 : i32
    %c0_i32_0 = arith.constant 0 : i32
    %c0_i32_1 = arith.constant 0 : i32
    return %c0_i32, %c0_i32_0 : i32, i32
  }
  func.func @transform_3(%arg0: i32, %arg1: i32) -> (i32, i32, i32) {
    %c0_i32 = arith.constant 0 : i32
    %c0_i32_0 = arith.constant 0 : i32
    return %arg0, %c0_i32, %arg1 : i32, i32, i32
  }
}

</mosaic_0001>

<llo_original>
// kernel: tpu_custom_call.1
$region0: #{tpu_custom_call.1}
  #allocation0 [shape = 'u32[]', space=smem, size = 0x4, offset = 0x4, fixed_abs, tag = 'smem constant byte address 0x4 - core index']
  #allocation1 [shape = 'u32[72,128]{1,0:T(1,128)}', space=vmem, size = 0x9000, scoped, tag = 'internal scratch']
  %s0 = inlined_call_operand.hbm [shape: f32[2,64,256], index: 0, kind: input, shape index: {}]
  %s1 = inlined_call_operand.vmem [shape: f32[32,64], index: 1, kind: input, shape index: {}]
  %s2 = inlined_call_operand.vmem [shape: f32[32,1], index: 2, kind: input, shape index: {}]
  %s3 = inlined_call_operand.hbm [shape: f32[2,32,256], index: 3, kind: output, shape index: {}]
  %s4 = sld [smem:[#allocation0]]
  $region49: #{tpu_custom_call.1} parent=0
    _
  %s6 = ssub.s32 1, %s4
  %s7 = scalar_select 0, %s6, %s4
  $region1: #{tpu_custom_call.1} parent=0
    #allocation2 [shape = 'u8[131072]{0}', space=vmem, size = 0x20000, scoped, tag = 'input window, operand 0']
    #allocation3 [shape = 's32[2]{0}', space=sflag, size = 0x8, scoped, tag = 'scoped memory for tpu_custom_call.1']
    #allocation4 [shape = 's32[2]{0}', space=sflag, size = 0x8, scoped, tag = 'scoped memory for tpu_custom_call.1']
    #allocation5 [shape = 'u8[65536]{0}', space=vmem, size = 0x10000, scoped, tag = 'output window, operand 0']
    %8 = vsyncpa [#allocation3], 0
    %s9 = scalar_lea.sflag [#allocation3], 1
    %10 = vsyncpa %s9, 0
    %11 = vsyncpa [#allocation4], 0
    %s12 = scalar_lea.sflag [#allocation4], 1
    %13 = vsyncpa %s12, 0
    loop: start=0, step=1, limit=4
    $region2: #{tpu_custom_call.1} parent=1 // loop_pre_header
      _
    $region3: #{tpu_custom_call.1} parent=1 // loop_header
      %s15 = sphi 0, %s19
      %p16 = scmp.ge.s32.totalorder %s15, 4
      %s22 = sphi 0, %s34
      %s23 = sphi 0, %s30
      %s24 = sphi 0, %s22
      %s25 = sphi 0, %s23
      %s26 = sphi 0, %s24
      %s27 = sphi 0, %s25
      %s39 = sphi 0, %s41
      %s42 = sphi 0, %s39
      %s43 = sphi 0, %s42
      %s59 = sphi 0, %s43
      %s63 = sphi 0, %s63
      %s65 = sphi 0, %s63
      %s66 = sphi 0, %s65
      %s80 = sphi 0, %s66
      %s84 = sphi 0, %s84
      %s86 = sphi 0, %s84
      %s87 = sphi 0, %s86
      %s101 = sphi 0, %s87
      %s109 = sphi 0, %s111
      %s112 = sphi 0, %s109
      %s113 = sphi 0, %s112
      %s129 = sphi 0, %s113
    $region4: #{tpu_custom_call.1} parent=1 // loop_header_branch
      %18 = sbr.rel (%p16) target = $region8
    $region5: #{tpu_custom_call.1} parent=1 // loop_body
      %s20 = ssub.s32 %s15, 1
      %s21 = ssub.s32 %s15, 2
      %s28 = sadd.s32 1, %s23
      %p29 = scmp.ge.s32.totalorder %s28, 1
      %s30 = scalar_select %p29, 0, %s28
      %s31 = sadd.s32 1, %s22
      %s32 = scalar_select %p29, %s31, %s22
      %p33 = scmp.ge.s32.totalorder %s32, 2
      %s34 = scalar_select %p33, 0, %s32
      %s35 = ssub.s32 %s22, %s34
      %s36 = ssub.s32 %s23, %s30
      %s37 = sor.u32 %s35, %s36
      %p38 = scmp.eq.s32.totalorder %s37, 0
      %s40 = sadd.s32 %s39, 1
      %s41 = scalar_select %p38, %s39, %s40
      %p44 = pneg %p38
      %p45 = scmp.eq.s32.totalorder %s15, 1
      %p46 = por %p44, %p45
      %p47 = scmp.ne.s32.totalorder %s39, %s42
      %p48 = scmp.eq.s32.totalorder %s15, 0
      %p49 = por %p47, %p48
      %p50 = scmp.ne.s32.totalorder %s39, %s42
      %p51 = scmp.eq.s32.totalorder %s20, 1
      %p52 = por %p50, %p51
      %p53 = scmp.ne.s32.totalorder %s42, %s43
      %p54 = scmp.eq.s32.totalorder %s20, 0
      %p55 = por %p53, %p54
      %p56 = scmp.ne.s32.totalorder %s42, %s43
      %p57 = scmp.eq.s32.totalorder %s21, 1
      %p58 = por %p56, %p57
      %p60 = scmp.ne.s32.totalorder %s43, %s59
      %p61 = scmp.eq.s32.totalorder %s21, 0
      %p62 = por %p60, %p61
      %s64 = sadd.s32 %s63, 1
      %p67 = scmp.eq.s32.totalorder %s15, 1
      %p68 = scmp.ne.s32.totalorder %s63, %s65
      %p69 = scmp.eq.s32.totalorder %s15, 0
      %p70 = por %p68, %p69
      %p71 = scmp.ne.s32.totalorder %s63, %s65
      %p72 = scmp.eq.s32.totalorder %s20, 1
      %p73 = por %p71, %p72
      %p74 = scmp.ne.s32.totalorder %s65, %s66
      %p75 = scmp.eq.s32.totalorder %s20, 0
      %p76 = por %p74, %p75
      %p77 = scmp.ne.s32.totalorder %s65, %s66
      %p78 = scmp.eq.s32.totalorder %s21, 1
      %p79 = por %p77, %p78
      %p81 = scmp.ne.s32.totalorder %s66, %s80
      %p82 = scmp.eq.s32.totalorder %s21, 0
      %p83 = por %p81, %p82
      %s85 = sadd.s32 %s84, 1
      %p88 = scmp.eq.s32.totalorder %s15, 1
      %p89 = scmp.ne.s32.totalorder %s84, %s86
      %p90 = scmp.eq.s32.totalorder %s15, 0
      %p91 = por %p89, %p90
      %p92 = scmp.ne.s32.totalorder %s84, %s86
      %p93 = scmp.eq.s32.totalorder %s20, 1
      %p94 = por %p92, %p93
      %p95 = scmp.ne.s32.totalorder %s86, %s87
      %p96 = scmp.eq.s32.totalorder %s20, 0
      %p97 = por %p95, %p96
      %p98 = scmp.ne.s32.totalorder %s86, %s87
      %p99 = scmp.eq.s32.totalorder %s21, 1
      %p100 = por %p98, %p99
      %p102 = scmp.ne.s32.totalorder %s87, %s101
      %p103 = scmp.eq.s32.totalorder %s21, 0
      %p104 = por %p102, %p103
      %s105 = ssub.s32 %s22, %s34
      %s106 = ssub.s32 %s23, %s30
      %s107 = sor.u32 %s105, %s106
      %p108 = scmp.eq.s32.totalorder %s107, 0
      %s110 = sadd.s32 %s109, 1
      %s111 = scalar_select %p108, %s109, %s110
      %p114 = pneg %p108
      %p115 = scmp.eq.s32.totalorder %s15, 1
      %p116 = por %p114, %p115
      %p117 = scmp.ne.s32.totalorder %s109, %s112
      %p118 = scmp.eq.s32.totalorder %s15, 0
      %p119 = por %p117, %p118
      %p120 = scmp.ne.s32.totalorder %s109, %s112
      %p121 = scmp.eq.s32.totalorder %s20, 1
      %p122 = por %p120, %p121
      %p123 = scmp.ne.s32.totalorder %s112, %s113
      %p124 = scmp.eq.s32.totalorder %s20, 0
      %p125 = por %p123, %p124
      %p126 = scmp.ne.s32.totalorder %s112, %s113
      %p127 = scmp.eq.s32.totalorder %s21, 1
      %p128 = por %p126, %p127
      %p130 = scmp.ne.s32.totalorder %s113, %s129
      %p131 = scmp.eq.s32.totalorder %s21, 0
      %p132 = por %p130, %p131
      %p133 = scmp.le.s32.totalorder 1, %s15
      %p134 = scmp.lt.s32.totalorder %s15, 3
      %p135 = pnand %p133, %p134
      %p136 = pneg %p135
      // Predicated region
      $region9: #{tpu_custom_call.1} parent=5 // pred_check
        _
      $region10: #{tpu_custom_call.1} parent=5 // pred_check_branch
        %138 = sbr.rel (%p135) target = $region12
      $region11: #{tpu_custom_call.1} parent=5 // pred_region
        %s139 = ssub.s32 %s15, 1
        // Predicated region
        $region13: #{tpu_custom_call.1} parent=11 // pred_check
          %p140 = pneg %p76
        $region14: #{tpu_custom_call.1} parent=11 // pred_check_branch
          %142 = sbr.rel (%p140) target = $region16
        $region15: #{tpu_custom_call.1} parent=11 // pred_region
          _
        $region16: #{tpu_custom_call.1} parent=11 // pred_fallthru
          _
        // Predicated region
        $region17: #{tpu_custom_call.1} parent=11 // pred_check
          %p143 = pneg %p97
        $region18: #{tpu_custom_call.1} parent=11 // pred_check_branch
          %145 = sbr.rel (%p143) target = $region20
        $region19: #{tpu_custom_call.1} parent=11 // pred_region
          _
        $region20: #{tpu_custom_call.1} parent=11 // pred_fallthru
          _
      $region12: #{tpu_custom_call.1} parent=5 // pred_fallthru
        _
      %p146 = scmp.lt.s32.totalorder %s15, 2
      // Predicated region
      $region21: #{tpu_custom_call.1} parent=5 // pred_check
        %p147 = pneg %p146
      $region22: #{tpu_custom_call.1} parent=5 // pred_check_branch
        %149 = sbr.rel (%p147) target = $region24
      $region23: #{tpu_custom_call.1} parent=5 // pred_region
        // Predicated region
        $region25: #{tpu_custom_call.1} parent=23 // pred_check
          %p150 = pneg %p49
        $region26: #{tpu_custom_call.1} parent=23 // pred_check_branch
          %152 = sbr.rel (%p150) target = $region28
        $region27: #{tpu_custom_call.1} parent=23 // pred_region
          %s153 = sand.u32 %s39, 1
          %s154 = scalar_lea.sflag [#allocation3], %s153
          %s155 = sand.u32 %s39, 1
          %s156 = smul.addr %s155, 128
          %s157 = scalar_lea.vmem [#allocation2], %s156
          %s158 = smul.u32 2, %s23
          %160 = vsyncadd %s154, 0
          %s161 = smul.addr %s22, 16
          %s162 = sadd.s32 %s158, %s161
          %s163 = smul.addr %s162, 8
          %s164 = scalar_lea.hbm %s0, %s163
          %s165 = sshll.u32 %s164, 4
          %s166 = int_to_ptr.hbm [resolvable:$true] %s165
          %s167 = sshll.u32 %s157, 4
          %s168 = int_to_ptr.vmem [resolvable:$true] %s167
          %173 = dma.hbm_to_vmem [thread:$0]  %s166, 2048, %s168, %s154, 256, 256, 16
        $region28: #{tpu_custom_call.1} parent=23 // pred_fallthru
          _
      $region24: #{tpu_custom_call.1} parent=5 // pred_fallthru
        _
      %p174 = scmp.le.s32.totalorder 1, %s15
      %p175 = scmp.lt.s32.totalorder %s15, 3
      %p176 = pnand %p174, %p175
      %p177 = pneg %p176
      // Predicated region
      $region29: #{tpu_custom_call.1} parent=5 // pred_check
        _
      $region30: #{tpu_custom_call.1} parent=5 // pred_check_branch
        %179 = sbr.rel (%p176) target = $region32
      $region31: #{tpu_custom_call.1} parent=5 // pred_region
        %s180 = ssub.s32 %s15, 1
        %s181 = sand.u32 %s42, 1
        %s182 = scalar_lea.sflag [#allocation3], %s181
        %s183 = sand.u32 %s42, 1
        %s184 = smul.addr %s183, 128
        %s185 = scalar_lea.vmem [#allocation2], %s184
        // Predicated region
        $region33: #{tpu_custom_call.1} parent=31 // pred_check
          %p186 = pneg %p55
        $region34: #{tpu_custom_call.1} parent=31 // pred_check_branch
          %188 = sbr.rel (%p186) target = $region36
        $region35: #{tpu_custom_call.1} parent=31 // pred_region
          %190 = dma.done %s182, 2048
        $region36: #{tpu_custom_call.1} parent=31 // pred_fallthru
          _
        %s191 = sand.u32 %s42, 1
        %s192 = scalar_lea.sflag [#allocation3], %s191
        %s193 = sand.u32 %s42, 1
        %s194 = smul.addr %s193, 128
        %s195 = scalar_lea.vmem [#allocation2], %s194
        %p196 = pneg %p55
        %p197 = pneg %p52
        %p198 = pneg %p76
        %p199 = pneg %p73
        %p200 = pneg %p97
        %p201 = pneg %p94
        %p202 = pneg %p125
        %p203 = pneg %p122
        %s204 = sand.u32 %s112, 1
        %s205 = scalar_lea.sflag [#allocation4], %s204
        %s206 = sand.u32 %s112, 1
        %s207 = smul.addr %s206, 64
        %s208 = scalar_lea.vmem [#allocation5], %s207
        %s209 = smul.u32 2, %s25
        %s210 = smul.u32 2, %s25
        %v211 = vld [vmem:[%s1] sm:$0xff]
        %v212 = vld [vmem:[%s1 + $0x8] sm:$0xff]
        %v213 = vld [vmem:[%s1 + $0x10] sm:$0xff]
        %v214 = vld [vmem:[%s1 + $0x18] sm:$0xff]
        %v215 = vld [vmem:[%s185] sm:$0xff]
        %v216 = vld [vmem:[%s185 + $0x8] sm:$0xff]
        %v217 = vld [vmem:[%s185 + $0x10] sm:$0xff]
        %v218 = vld [vmem:[%s185 + $0x18] sm:$0xff]
        %v219 = vld [vmem:[%s185 + $0x20] sm:$0xff]
        %v220 = vld [vmem:[%s185 + $0x28] sm:$0xff]
        %v221 = vld [vmem:[%s185 + $0x30] sm:$0xff]
        %v222 = vld [vmem:[%s185 + $0x38] sm:$0xff]
        %v223 = vld [vmem:[%s185 + $0x40] sm:$0xff]
        %v224 = vld [vmem:[%s185 + $0x48] sm:$0xff]
        %v225 = vld [vmem:[%s185 + $0x50] sm:$0xff]
        %v226 = vld [vmem:[%s185 + $0x58] sm:$0xff]
        %v227 = vld [vmem:[%s185 + $0x60] sm:$0xff]
        %v228 = vld [vmem:[%s185 + $0x68] sm:$0xff]
        %v229 = vld [vmem:[%s185 + $0x70] sm:$0xff]
        %v230 = vld [vmem:[%s185 + $0x78] sm:$0xff]
        %v231 = vld [vmem:[%s2] sm:$0xff]
        %v232 = vld [vmem:[%s2 + $0x8] sm:$0xff]
        %v233 = vld [vmem:[%s2 + $0x10] sm:$0xff]
        %v234 = vld [vmem:[%s2 + $0x18] sm:$0xff]
        %236 = vset.pattern.permute.xlu0 0
        %237 = vperm.xlu0 %236, %v231
        %v238 = vpop.permute.xlu0 %237
        %241 = vset.pattern.permute.xlu0 0
        %242 = vperm.xlu0 %241, %v232
        %v243 = vpop.permute.xlu0 %242
        %246 = vset.pattern.permute.xlu0 0
        %247 = vperm.xlu0 %246, %v233
        %v248 = vpop.permute.xlu0 %247
        %251 = vset.pattern.permute.xlu0 0
        %252 = vperm.xlu0 %251, %v234
        %v253 = vpop.permute.xlu0 %252
        %vm255 = vcmask 523264
        %v257 = vsel %vm255, %v211, 0
        %v260 = vsel %vm255, %v212, 0
        %v263 = vsel %vm255, %v213, 0
        %v266 = vsel %vm255, %v214, 0
        %268 = vmatpush.msra.mxu0 0.0
        %269 = vmatpush.msra.mxu0 0.0
        %270 = vmatpush.msra.mxu0 0.0
        %271 = vmatpush.msra.mxu0 0.0
        %272 = vmatpush.msra.mxu0 0.0
        %273 = vmatpush.msra.mxu0 0.0
        %274 = vmatpush.msra.mxu0 0.0
        %275 = vmatpush.msra.mxu0 0.0
        %276 = vmatpush.msra.mxu0 %v229
        %277 = vmatpush.msra.mxu0 %v227
        %278 = vmatpush.msra.mxu0 %v225
        %279 = vmatpush.msra.mxu0 %v223
        %280 = vmatpush.msra.mxu0 %v221
        %281 = vmatpush.msra.mxu0 %v219
        %282 = vmatpush.msra.mxu0 %v217
        %283 = vmatpush.msra.mxu0 %v215
        %284 = vmatmul.f32.gmra.mxu0 %v257
        %v285 = vpop.f32.mrf.mxu0
        %v286 = vadd.f32 %v238, %v285
        %287 = vmatmul.f32.gmra.mxu0 %v260
        %v288 = vpop.f32.mrf.mxu0
        %v289 = vadd.f32 %v243, %v288
        %290 = vmatmul.f32.gmra.mxu0 %v263
        %v291 = vpop.f32.mrf.mxu0
        %v292 = vadd.f32 %v248, %v291
        %293 = vmatmul.f32.gmra.mxu0 %v266
        %v294 = vpop.f32.mrf.mxu0
        %v295 = vadd.f32 %v253, %v294
        %296 = vdwg.mxu0
        %297 = vmatpush.msra.mxu0 0.0
        %298 = vmatpush.msra.mxu0 0.0
        %299 = vmatpush.msra.mxu0 0.0
        %300 = vmatpush.msra.mxu0 0.0
        %301 = vmatpush.msra.mxu0 0.0
        %302 = vmatpush.msra.mxu0 0.0
        %303 = vmatpush.msra.mxu0 0.0
        %304 = vmatpush.msra.mxu0 0.0
        %305 = vmatpush.msra.mxu0 %v230
        %306 = vmatpush.msra.mxu0 %v228
        %307 = vmatpush.msra.mxu0 %v226
        %308 = vmatpush.msra.mxu0 %v224
        %309 = vmatpush.msra.mxu0 %v222
        %310 = vmatpush.msra.mxu0 %v220
        %311 = vmatpush.msra.mxu0 %v218
        %312 = vmatpush.msra.mxu0 %v216
        %313 = vmatmul.f32.gmra.mxu0 %v257
        %v314 = vpop.f32.mrf.mxu0
        %v315 = vadd.f32 %v238, %v314
        %316 = vmatmul.f32.gmra.mxu0 %v260
        %v317 = vpop.f32.mrf.mxu0
        %v318 = vadd.f32 %v243, %v317
        %319 = vmatmul.f32.gmra.mxu0 %v263
        %v320 = vpop.f32.mrf.mxu0
        %v321 = vadd.f32 %v248, %v320
        %322 = vmatmul.f32.gmra.mxu0 %v266
        %v323 = vpop.f32.mrf.mxu0
        %v324 = vadd.f32 %v253, %v323
        %325 = vdwg.mxu0
        %v326 = vmax.f32 %v286, 0.0
        %v327 = vmax.f32 %v315, 0.0
        %v328 = vmax.f32 %v289, 0.0
        %v329 = vmax.f32 %v318, 0.0
        %v330 = vmax.f32 %v292, 0.0
        %v331 = vmax.f32 %v321, 0.0
        %v332 = vmax.f32 %v295, 0.0
        %v333 = vmax.f32 %v324, 0.0
        %334 = vst [vmem:[%s208] sm:$0xff] %v326
        %335 = vst [vmem:[%s208 + $0x8] sm:$0xff] %v327
        %336 = vst [vmem:[%s208 + $0x10] sm:$0xff] %v328
        %337 = vst [vmem:[%s208 + $0x18] sm:$0xff] %v329
        %338 = vst [vmem:[%s208 + $0x20] sm:$0xff] %v330
        %339 = vst [vmem:[%s208 + $0x28] sm:$0xff] %v331
        %340 = vst [vmem:[%s208 + $0x30] sm:$0xff] %v332
        %341 = vst [vmem:[%s208 + $0x38] sm:$0xff] %v333
        %s342 = sand.u32 %s112, 1
        %s343 = scalar_lea.sflag [#allocation4], %s342
        %s344 = sand.u32 %s112, 1
        %s345 = smul.addr %s344, 64
        %s346 = scalar_lea.vmem [#allocation5], %s345
        // Predicated region
        $region37: #{tpu_custom_call.1} parent=31 // pred_check
          %p347 = pneg %p122
        $region38: #{tpu_custom_call.1} parent=31 // pred_check_branch
          %349 = sbr.rel (%p347) target = $region40
        $region39: #{tpu_custom_call.1} parent=31 // pred_region
          %s350 = smul.u32 2, %s25
          %352 = vsyncadd %s343, 0
          %s353 = smul.addr %s24, 8
          %s354 = sadd.s32 %s350, %s353
          %s355 = smul.addr %s354, 8
          %s356 = scalar_lea.hbm %s3, %s355
          %s357 = sshll.u32 %s346, 4
          %s358 = int_to_ptr.vmem [resolvable:$true] %s357
          %s359 = sshll.u32 %s356, 4
          %s360 = int_to_ptr.hbm [resolvable:$true] %s359
          %365 = dma.vmem_to_hbm [thread:$0]  %s358, 1024, %s360, %s343, 256, 256, 16
        $region40: #{tpu_custom_call.1} parent=31 // pred_fallthru
          _
      $region32: #{tpu_custom_call.1} parent=5 // pred_fallthru
        _
      %p366 = scmp.le.s32.totalorder 2, %s15
      // Predicated region
      $region41: #{tpu_custom_call.1} parent=5 // pred_check
        %p367 = pneg %p366
      $region42: #{tpu_custom_call.1} parent=5 // pred_check_branch
        %369 = sbr.rel (%p367) target = $region44
      $region43: #{tpu_custom_call.1} parent=5 // pred_region
        %s370 = ssub.s32 %s15, 2
        // Predicated region
        $region45: #{tpu_custom_call.1} parent=43 // pred_check
          %p371 = pneg %p128
        $region46: #{tpu_custom_call.1} parent=43 // pred_check_branch
          %373 = sbr.rel (%p371) target = $region48
        $region47: #{tpu_custom_call.1} parent=43 // pred_region
          %s374 = sand.u32 %s113, 1
          %s375 = scalar_lea.sflag [#allocation4], %s374
          %s376 = sand.u32 %s113, 1
          %s377 = smul.addr %s376, 64
          %s378 = scalar_lea.vmem [#allocation5], %s377
          %380 = dma.done %s375, 1024
        $region48: #{tpu_custom_call.1} parent=43 // pred_fallthru
          _
      $region44: #{tpu_custom_call.1} parent=5 // pred_fallthru
        _
    $region6: #{tpu_custom_call.1} parent=1 // loop_footer
      %s19 = sadd.s32 1, %s15
    $region7: #{tpu_custom_call.1} parent=1 // loop_footer_branch
      %14 = sbr.rel target = $region3
    $region8: #{tpu_custom_call.1} parent=1 // loop_exit
      _
    %381 = vsyncpa [#allocation3], 1
    %s382 = scalar_lea.sflag [#allocation3], 1
    %383 = vsyncpa %s382, 1
    %384 = vsyncpa [#allocation4], 1
    %s385 = scalar_lea.sflag [#allocation4], 1
    %386 = vsyncpa %s385, 1

</llo_original>
